<compile_context>
chip_gen: v5e
topology: v5e:2x2
jax: 0.10.0
libtpu: 0.0.40
codegen_flags: <defaults>
</compile_context>

<pallas_src>
import functools

import jax
import jax.numpy as jnp
from jax import lax
from jax.experimental import pallas as pl
from jax.experimental.pallas import tpu as pltpu


def _oc_angle_kernel(x_ref, w_ref, out_ref, *, pos_a, pos_b, neg_a, neg_b):
    x = x_ref[...].astype(jnp.float32)          # (tb, D)
    w = w_ref[...].astype(jnp.float32)          # (1, D) lane-major weight row

    # Fused reductions: read x once, reduce along the lane axis.
    inner = jnp.sum(x * w, axis=1)              # (tb,)  == x @ w
    sumsq = jnp.sum(x * x, axis=1)              # (tb,)  == ||x||^2

    # cos_theta = clamp(inner / ||x||, -1, 1); rsqrt runs on the EUP slot.
    cos = jnp.clip(inner * lax.rsqrt(sumsq), -1.0, 1.0)
    cos = cos[None, :]                          # (1, tb), lane-dense

    pos_row = pos_a * cos + pos_b               # (1, tb)
    neg_row = neg_a * cos + neg_b               # (1, tb)
    out_ref[...] = jnp.concatenate([pos_row, neg_row], axis=0)   # (2, tb)


def _pick_block_b(batch, feat_dim, itemsize, budget_bytes=12 << 20):
    """Rows per tile: multiple of 128; double-buffered x tile under budget.

    12 MiB for 2x the streamed x tile fits comfortably inside the default
    scoped VMEM on v5e (16 MiB), v6e (32 MiB) and v7x (32 MiB scoped /
    64 MiB physical), leaving room for the tiny weight/output buffers.
    """
    rows_cap = budget_bytes // (2 * itemsize * max(feat_dim, 1))
    rows_cap = max(128, min(2048, (rows_cap // 128) * 128))
    rows_needed = pl.cdiv(batch, 128) * 128
    block_b = min(rows_cap, rows_needed)
    # Prefer >= 2 grid steps when the batch allows it, so the pipeline has
    # something to overlap and v7x's second TensorCore is not idle.
    if block_b == rows_needed and rows_needed >= 256:
        block_b = pl.cdiv(pl.cdiv(rows_needed, 2), 128) * 128
    return block_b


def oc_angle_layer(x, weight, *, w_posi=0.9, w_nega=0.2, alpha=20.0,
                   flag_angle_only=False, block_b=None):
    """Forward pass of OCAngleLayer.

    x:      (B, D) float32 or bfloat16
    weight: (D, 1) raw parameter (renormalized here like PyTorch's forward)
    returns (pos_score, neg_score), each (B, 1) float32
    """
    B, D = x.shape
    assert weight.shape == (D, 1)

    # weight.renorm(2, 1, 1e-5).mul(1e5): column scaled to unit L2 norm
    # (parameter-setup glue; stays in plain JAX).
    w32 = weight.astype(jnp.float32)
    col_norm = jnp.sqrt(jnp.sum(w32 * w32, axis=0, keepdims=True))
    scale = jnp.where(col_norm > 1e-5, 1e-5 / col_norm, 1.0) * 1e5
    w_row = (w32 * scale).reshape(1, D)            # lane-major (1, D)

    if block_b is None:
        block_b = _pick_block_b(B, D, jnp.dtype(x.dtype).itemsize)
    assert block_b % 128 == 0
    b_pad = pl.cdiv(B, block_b) * block_b
    if b_pad != B:
        # TODO(synk): mask the tail tile in-kernel instead of padding in HBM.
        x = jnp.pad(x, ((0, b_pad - B), (0, 0)))
    grid = (b_pad // block_b,)

    if flag_angle_only:
        pos_a, pos_b = 1.0, 0.0
        neg_a, neg_b = 1.0, 0.0
    else:
        pos_a, pos_b = -float(alpha), float(alpha) * float(w_posi)
        neg_a, neg_b = float(alpha), -float(alpha) * float(w_nega)

    kernel = functools.partial(_oc_angle_kernel, pos_a=pos_a, pos_b=pos_b,
                               neg_a=neg_a, neg_b=neg_b)

    out = pl.pallas_call(
        kernel,
        out_shape=jax.ShapeDtypeStruct((2, b_pad), jnp.float32),
        grid_spec=pltpu.PrefetchScalarGridSpec(
            num_scalar_prefetch=0,
            grid=grid,
            in_specs=[
                pl.BlockSpec((block_b, D), lambda i: (i, 0)),   # x tile
                pl.BlockSpec((1, D), lambda i: (0, 0)),         # weight row
            ],
            out_specs=pl.BlockSpec((2, block_b), lambda i: (0, i)),
        ),
        compiler_params=pltpu.CompilerParams(
            dimension_semantics=("parallel",)),
    )(x, w_row)

    pos = out[0, :B].reshape(B, 1)
    neg = out[1, :B].reshape(B, 1)
    return pos, neg


def _reference(x, weight, w_posi=0.9, w_nega=0.2, alpha=20.0):
    x = x.astype(jnp.float32)
    w32 = weight.astype(jnp.float32)
    col_norm = jnp.sqrt(jnp.sum(w32 * w32, axis=0, keepdims=True))
    scale = jnp.where(col_norm > 1e-5, 1e-5 / col_norm, 1.0) * 1e5
    w = w32 * scale
    x_mod = jnp.sqrt(jnp.sum(x * x, axis=1, keepdims=True))
    cos_theta = jnp.clip((x @ w) / x_mod, -1.0, 1.0)
    return alpha * (w_posi - cos_theta), -alpha * (w_nega - cos_theta)


if __name__ == "__main__":
    key = jax.random.PRNGKey(0)
    k_x, k_w = jax.random.split(key)

    B, D = 8, 32                       # (batchsize, input_dim)
    x = jax.random.normal(k_x, (B, D), dtype=jnp.float32)

    # Deterministic synthetic parameter init (kaiming-uniform-style range);
    # the forward pass renormalizes it to unit column norm anyway.
    weight = jax.random.uniform(k_w, (D, 1), dtype=jnp.float32,
                                minval=-1.0, maxval=1.0)

    pos, neg = oc_angle_layer(x, weight)
    jax.block_until_ready((pos, neg))

    pos_ref, neg_ref = _reference(x, weight)
    assert pos.shape == (B, 1) and neg.shape == (B, 1)
    assert jnp.allclose(pos, pos_ref, atol=1e-3, rtol=1e-4)
    assert jnp.allclose(neg, neg_ref, atol=1e-3, rtol=1e-4)

    print("KERNEL_OK")
</pallas_src>

<mosaic_0001>
module attributes {stable_mosaic.version = 11 : i64} {
  func.func @_oc_angle_kernel(%arg0: i32, %arg1: memref<128x32xf32, #tpu.memory_space<vmem>>, %arg2: memref<1x32xf32, #tpu.memory_space<vmem>>, %arg3: memref<2x128xf32, #tpu.memory_space<vmem>>) attributes {dimension_semantics = [#tpu.dimension_semantics<parallel>], iteration_bounds = array<i64: 1>, scalar_prefetch = 0 : i64, scratch_operands = 0 : i64, tpu.core_type = #tpu.core_type<tc>, window_params = [{transform_indices = @transform_0, window_bounds = array<i64: 128, 32>}, {pipeline_mode = #tpu.pipeline_mode<synchronous>, transform_indices = @transform_1, window_bounds = array<i64: 1, 32>}, {transform_indices = @transform_2, window_bounds = array<i64: 2, 128>}]} {
    %c0 = arith.constant 0 : index
    %c0_0 = arith.constant 0 : index
    %0 = vector.load %arg1[%c0, %c0_0] : memref<128x32xf32, #tpu.memory_space<vmem>>, vector<128x32xf32>
    %c0_1 = arith.constant 0 : index
    %c0_2 = arith.constant 0 : index
    %1 = vector.load %arg2[%c0_1, %c0_2] : memref<1x32xf32, #tpu.memory_space<vmem>>, vector<1x32xf32>
    %2 = vector.broadcast %1 : vector<1x32xf32> to vector<128x32xf32>
    %3 = arith.mulf %0, %2 : vector<128x32xf32>
    %cst = arith.constant dense<0.000000e+00> : vector<128xf32>
    %4 = vector.multi_reduction <add>, %3, %cst [1] : vector<128x32xf32> to vector<128xf32>
    %5 = arith.mulf %0, %0 : vector<128x32xf32>
    %cst_3 = arith.constant dense<0.000000e+00> : vector<128xf32>
    %6 = vector.multi_reduction <add>, %5, %cst_3 [1] : vector<128x32xf32> to vector<128xf32>
    %7 = math.rsqrt %6 : vector<128xf32>
    %8 = arith.mulf %4, %7 : vector<128xf32>
    %cst_4 = arith.constant -1.000000e+00 : f32
    %cst_5 = arith.constant 1.000000e+00 : f32
    %9 = vector.broadcast %cst_4 : f32 to vector<128xf32>
    %10 = arith.maximumf %9, %8 : vector<128xf32>
    %11 = vector.broadcast %cst_5 : f32 to vector<128xf32>
    %12 = arith.minimumf %11, %10 : vector<128xf32>
    %13 = vector.shape_cast %12 : vector<128xf32> to vector<1x128xf32>
    %cst_6 = arith.constant -2.000000e+01 : f32
    %14 = vector.broadcast %cst_6 : f32 to vector<1x128xf32>
    %15 = arith.mulf %14, %13 : vector<1x128xf32>
    %cst_7 = arith.constant 1.800000e+01 : f32
    %16 = vector.broadcast %cst_7 : f32 to vector<1x128xf32>
    %17 = arith.addf %15, %16 : vector<1x128xf32>
    %cst_8 = arith.constant 2.000000e+01 : f32
    %18 = vector.broadcast %cst_8 : f32 to vector<1x128xf32>
    %19 = arith.mulf %18, %13 : vector<1x128xf32>
    %cst_9 = arith.constant -4.000000e+00 : f32
    %20 = vector.broadcast %cst_9 : f32 to vector<1x128xf32>
    %21 = arith.addf %19, %20 : vector<1x128xf32>
    %22 = tpu.concatenate %17, %21 in 0 : vector<1x128xf32>, vector<1x128xf32> -> vector<2x128xf32>
    %c0_10 = arith.constant 0 : index
    %c0_11 = arith.constant 0 : index
    %23 = vector.load %arg3[%c0_10, %c0_11] : memref<2x128xf32, #tpu.memory_space<vmem>>, vector<2x128xf32>
    tpu.vector_store %arg3[%c0_10, %c0_11], %22 {strides = array<i32>} : memref<2x128xf32, #tpu.memory_space<vmem>>, vector<2x128xf32>,
    return
  }
  func.func @transform_0(%arg0: i32) -> (i32, i32) {
    %c0_i32 = arith.constant 0 : i32
    %c0_i32_0 = arith.constant 0 : i32
    return %arg0, %c0_i32 : i32, i32
  }
  func.func @transform_1(%arg0: i32) -> (i32, i32) {
    %c0_i32 = arith.constant 0 : i32
    %c0_i32_0 = arith.constant 0 : i32
    %c0_i32_1 = arith.constant 0 : i32
    return %c0_i32, %c0_i32_0 : i32, i32
  }
  func.func @transform_2(%arg0: i32) -> (i32, i32) {
    %c0_i32 = arith.constant 0 : i32
    %c0_i32_0 = arith.constant 0 : i32
    return %c0_i32, %arg0 : i32, i32
  }
}

</mosaic_0001>

<llo_original>
// kernel: tpu_custom_call.1
$region0: #{tpu_custom_call.1}
  #allocation0 [shape = 'u32[]', space=smem, size = 0x4, offset = 0x4, fixed_abs, tag = 'smem constant byte address 0x4 - core index']
  #allocation1 [shape = 'u32[72,128]{1,0:T(1,128)}', space=vmem, size = 0x9000, scoped, tag = 'internal scratch']
  %s0 = inlined_call_operand.vmem [shape: f32[128,32], index: 0, kind: input, shape index: {}]
  %s1 = inlined_call_operand.vmem [shape: f32[1,32], index: 1, kind: input, shape index: {}]
  %s2 = inlined_call_operand.hbm [shape: f32[2,128], index: 2, kind: output, shape index: {}]
  %s3 = sld [smem:[#allocation0]]
  $region18: #{tpu_custom_call.1} parent=0
    _
  %s5 = ssub.s32 1, %s3
  %s6 = scalar_select 0, %s5, %s3
  $region1: #{tpu_custom_call.1} parent=0
    #allocation2 [shape = 'u8[1024]{0}', space=vmem, size = 0x400, scoped, tag = 'output window, operand 0, single buffered']
    #allocation3 [shape = 's32[1]{0}', space=sflag, size = 0x4, scoped, tag = 'scoped memory for tpu_custom_call.1']
    %7 = vsyncpa [#allocation3], 0
    // Predicated region
    $region2: #{tpu_custom_call.1} parent=1 // pred_check
      _
    $region3: #{tpu_custom_call.1} parent=1 // pred_check_branch
      %9 = sbr.rel (0) target = $region5
    $region4: #{tpu_custom_call.1} parent=1 // pred_region
      _
    $region5: #{tpu_custom_call.1} parent=1 // pred_fallthru
      _
    // Predicated region
    $region6: #{tpu_custom_call.1} parent=1 // pred_check
      _
    $region7: #{tpu_custom_call.1} parent=1 // pred_check_branch
      %11 = sbr.rel (0) target = $region9
    $region8: #{tpu_custom_call.1} parent=1 // pred_region
      _
    $region9: #{tpu_custom_call.1} parent=1 // pred_fallthru
      _
    %v12 = vld [vmem:[%s0] sm:$0xff]
    %v13 = vld [vmem:[%s0 + $0x8] sm:$0xff]
    %v14 = vld [vmem:[%s0 + $0x10] sm:$0xff]
    %v15 = vld [vmem:[%s0 + $0x18] sm:$0xff]
    %v16 = vld [vmem:[%s0 + $0x20] sm:$0xff]
    %v17 = vld [vmem:[%s0 + $0x28] sm:$0xff]
    %v18 = vld [vmem:[%s0 + $0x30] sm:$0xff]
    %v19 = vld [vmem:[%s0 + $0x38] sm:$0xff]
    %v20 = vld [vmem:[%s0 + $0x40] sm:$0xff]
    %v21 = vld [vmem:[%s0 + $0x48] sm:$0xff]
    %v22 = vld [vmem:[%s0 + $0x50] sm:$0xff]
    %v23 = vld [vmem:[%s0 + $0x58] sm:$0xff]
    %v24 = vld [vmem:[%s0 + $0x60] sm:$0xff]
    %v25 = vld [vmem:[%s0 + $0x68] sm:$0xff]
    %v26 = vld [vmem:[%s0 + $0x70] sm:$0xff]
    %v27 = vld [vmem:[%s0 + $0x78] sm:$0xff]
    %v28 = vld [vmem:[%s1] sm:$0x1]
    %v30 = vperm.slane %v28, 0
    %v32 = vmul.f32 %v12, %v30
    %v33 = vmul.f32 %v13, %v30
    %v34 = vmul.f32 %v14, %v30
    %v35 = vmul.f32 %v15, %v30
    %v36 = vmul.f32 %v16, %v30
    %v37 = vmul.f32 %v17, %v30
    %v38 = vmul.f32 %v18, %v30
    %v39 = vmul.f32 %v19, %v30
    %v40 = vmul.f32 %v20, %v30
    %v41 = vmul.f32 %v21, %v30
    %v42 = vmul.f32 %v22, %v30
    %v43 = vmul.f32 %v23, %v30
    %v44 = vmul.f32 %v24, %v30
    %v45 = vmul.f32 %v25, %v30
    %v46 = vmul.f32 %v26, %v30
    %v47 = vmul.f32 %v27, %v30
    %vm48 = vcmask 261120
    %v49 = vsel %vm48, %v32, 0.0
    %50 = vadd.xlane.f32.xlu0 %v49
    %v51 = vpop.xlane.xlu0 %50
    %v52 = vsel %vm48, %v33, 0.0
    %53 = vadd.xlane.f32.xlu0 %v52
    %v54 = vpop.xlane.xlu0 %53
    %v55 = vsel %vm48, %v34, 0.0
    %56 = vadd.xlane.f32.xlu0 %v55
    %v57 = vpop.xlane.xlu0 %56
    %v58 = vsel %vm48, %v35, 0.0
    %59 = vadd.xlane.f32.xlu0 %v58
    %v60 = vpop.xlane.xlu0 %59
    %v61 = vsel %vm48, %v36, 0.0
    %62 = vadd.xlane.f32.xlu0 %v61
    %v63 = vpop.xlane.xlu0 %62
    %v64 = vsel %vm48, %v37, 0.0
    %65 = vadd.xlane.f32.xlu0 %v64
    %v66 = vpop.xlane.xlu0 %65
    %v67 = vsel %vm48, %v38, 0.0
    %68 = vadd.xlane.f32.xlu0 %v67
    %v69 = vpop.xlane.xlu0 %68
    %v70 = vsel %vm48, %v39, 0.0
    %71 = vadd.xlane.f32.xlu0 %v70
    %v72 = vpop.xlane.xlu0 %71
    %v73 = vsel %vm48, %v40, 0.0
    %74 = vadd.xlane.f32.xlu0 %v73
    %v75 = vpop.xlane.xlu0 %74
    %v76 = vsel %vm48, %v41, 0.0
    %77 = vadd.xlane.f32.xlu0 %v76
    %v78 = vpop.xlane.xlu0 %77
    %v79 = vsel %vm48, %v42, 0.0
    %80 = vadd.xlane.f32.xlu0 %v79
    %v81 = vpop.xlane.xlu0 %80
    %v82 = vsel %vm48, %v43, 0.0
    %83 = vadd.xlane.f32.xlu0 %v82
    %v84 = vpop.xlane.xlu0 %83
    %v85 = vsel %vm48, %v44, 0.0
    %86 = vadd.xlane.f32.xlu0 %v85
    %v87 = vpop.xlane.xlu0 %86
    %v88 = vsel %vm48, %v45, 0.0
    %89 = vadd.xlane.f32.xlu0 %v88
    %v90 = vpop.xlane.xlu0 %89
    %v91 = vsel %vm48, %v46, 0.0
    %92 = vadd.xlane.f32.xlu0 %v91
    %v93 = vpop.xlane.xlu0 %92
    %v94 = vsel %vm48, %v47, 0.0
    %95 = vadd.xlane.f32.xlu0 %v94
    %v96 = vpop.xlane.xlu0 %95
    %v97 = vmul.f32 %v12, %v12
    %v98 = vmul.f32 %v13, %v13
    %v99 = vmul.f32 %v14, %v14
    %v100 = vmul.f32 %v15, %v15
    %v101 = vmul.f32 %v16, %v16
    %v102 = vmul.f32 %v17, %v17
    %v103 = vmul.f32 %v18, %v18
    %v104 = vmul.f32 %v19, %v19
    %v105 = vmul.f32 %v20, %v20
    %v106 = vmul.f32 %v21, %v21
    %v107 = vmul.f32 %v22, %v22
    %v108 = vmul.f32 %v23, %v23
    %v109 = vmul.f32 %v24, %v24
    %v110 = vmul.f32 %v25, %v25
    %v111 = vmul.f32 %v26, %v26
    %v112 = vmul.f32 %v27, %v27
    %v113 = vsel %vm48, %v97, 0.0
    %114 = vadd.xlane.f32.xlu0 %v113
    %v115 = vpop.xlane.xlu0 %114
    %v116 = vsel %vm48, %v98, 0.0
    %117 = vadd.xlane.f32.xlu0 %v116
    %v118 = vpop.xlane.xlu0 %117
    %v119 = vsel %vm48, %v99, 0.0
    %120 = vadd.xlane.f32.xlu0 %v119
    %v121 = vpop.xlane.xlu0 %120
    %v122 = vsel %vm48, %v100, 0.0
    %123 = vadd.xlane.f32.xlu0 %v122
    %v124 = vpop.xlane.xlu0 %123
    %v125 = vsel %vm48, %v101, 0.0
    %126 = vadd.xlane.f32.xlu0 %v125
    %v127 = vpop.xlane.xlu0 %126
    %v128 = vsel %vm48, %v102, 0.0
    %129 = vadd.xlane.f32.xlu0 %v128
    %v130 = vpop.xlane.xlu0 %129
    %v131 = vsel %vm48, %v103, 0.0
    %132 = vadd.xlane.f32.xlu0 %v131
    %v133 = vpop.xlane.xlu0 %132
    %v134 = vsel %vm48, %v104, 0.0
    %135 = vadd.xlane.f32.xlu0 %v134
    %v136 = vpop.xlane.xlu0 %135
    %v137 = vsel %vm48, %v105, 0.0
    %138 = vadd.xlane.f32.xlu0 %v137
    %v139 = vpop.xlane.xlu0 %138
    %v140 = vsel %vm48, %v106, 0.0
    %141 = vadd.xlane.f32.xlu0 %v140
    %v142 = vpop.xlane.xlu0 %141
    %v143 = vsel %vm48, %v107, 0.0
    %144 = vadd.xlane.f32.xlu0 %v143
    %v145 = vpop.xlane.xlu0 %144
    %v146 = vsel %vm48, %v108, 0.0
    %147 = vadd.xlane.f32.xlu0 %v146
    %v148 = vpop.xlane.xlu0 %147
    %v149 = vsel %vm48, %v109, 0.0
    %150 = vadd.xlane.f32.xlu0 %v149
    %v151 = vpop.xlane.xlu0 %150
    %v152 = vsel %vm48, %v110, 0.0
    %153 = vadd.xlane.f32.xlu0 %v152
    %v154 = vpop.xlane.xlu0 %153
    %v155 = vsel %vm48, %v111, 0.0
    %156 = vadd.xlane.f32.xlu0 %v155
    %v157 = vpop.xlane.xlu0 %156
    %v158 = vsel %vm48, %v112, 0.0
    %159 = vadd.xlane.f32.xlu0 %v158
    %v160 = vpop.xlane.xlu0 %159
    %v161 = vrsqrt.pop %v115
    %v162 = vmul.f32 %v161, %v115
    %v163 = vmul.f32 %v162, %v161
    %v164 = vmul.f32 0.5, %v163
    %v165 = vsub.f32 1.5, %v164
    %v166 = vmul.f32 %v161, %v165
    %vm167 = vweird.f32 %v115
    %vm168 = vweird.f32 %v161
    %vm169 = vmor %vm167, %vm168
    %v170 = vsel %vm169, %v161, %v166
    %v171 = vrsqrt.pop %v118
    %v172 = vmul.f32 %v171, %v118
    %v173 = vmul.f32 %v172, %v171
    %v174 = vmul.f32 0.5, %v173
    %v175 = vsub.f32 1.5, %v174
    %v176 = vmul.f32 %v171, %v175
    %vm177 = vweird.f32 %v118
    %vm178 = vweird.f32 %v171
    %vm179 = vmor %vm177, %vm178
    %v180 = vsel %vm179, %v171, %v176
    %v181 = vrsqrt.pop %v121
    %v182 = vmul.f32 %v181, %v121
    %v183 = vmul.f32 %v182, %v181
    %v184 = vmul.f32 0.5, %v183
    %v185 = vsub.f32 1.5, %v184
    %v186 = vmul.f32 %v181, %v185
    %vm187 = vweird.f32 %v121
    %vm188 = vweird.f32 %v181
    %vm189 = vmor %vm187, %vm188
    %v190 = vsel %vm189, %v181, %v186
    %v191 = vrsqrt.pop %v124
    %v192 = vmul.f32 %v191, %v124
    %v193 = vmul.f32 %v192, %v191
    %v194 = vmul.f32 0.5, %v193
    %v195 = vsub.f32 1.5, %v194
    %v196 = vmul.f32 %v191, %v195
    %vm197 = vweird.f32 %v124
    %vm198 = vweird.f32 %v191
    %vm199 = vmor %vm197, %vm198
    %v200 = vsel %vm199, %v191, %v196
    %v201 = vrsqrt.pop %v127
    %v202 = vmul.f32 %v201, %v127
    %v203 = vmul.f32 %v202, %v201
    %v204 = vmul.f32 0.5, %v203
    %v205 = vsub.f32 1.5, %v204
    %v206 = vmul.f32 %v201, %v205
    %vm207 = vweird.f32 %v127
    %vm208 = vweird.f32 %v201
    %vm209 = vmor %vm207, %vm208
    %v210 = vsel %vm209, %v201, %v206
    %v211 = vrsqrt.pop %v130
    %v212 = vmul.f32 %v211, %v130
    %v213 = vmul.f32 %v212, %v211
    %v214 = vmul.f32 0.5, %v213
    %v215 = vsub.f32 1.5, %v214
    %v216 = vmul.f32 %v211, %v215
    %vm217 = vweird.f32 %v130
    %vm218 = vweird.f32 %v211
    %vm219 = vmor %vm217, %vm218
    %v220 = vsel %vm219, %v211, %v216
    %v221 = vrsqrt.pop %v133
    %v222 = vmul.f32 %v221, %v133
    %v223 = vmul.f32 %v222, %v221
    %v224 = vmul.f32 0.5, %v223
    %v225 = vsub.f32 1.5, %v224
    %v226 = vmul.f32 %v221, %v225
    %vm227 = vweird.f32 %v133
    %vm228 = vweird.f32 %v221
    %vm229 = vmor %vm227, %vm228
    %v230 = vsel %vm229, %v221, %v226
    %v231 = vrsqrt.pop %v136
    %v232 = vmul.f32 %v231, %v136
    %v233 = vmul.f32 %v232, %v231
    %v234 = vmul.f32 0.5, %v233
    %v235 = vsub.f32 1.5, %v234
    %v236 = vmul.f32 %v231, %v235
    %vm237 = vweird.f32 %v136
    %vm238 = vweird.f32 %v231
    %vm239 = vmor %vm237, %vm238
    %v240 = vsel %vm239, %v231, %v236
    %v241 = vrsqrt.pop %v139
    %v242 = vmul.f32 %v241, %v139
    %v243 = vmul.f32 %v242, %v241
    %v244 = vmul.f32 0.5, %v243
    %v245 = vsub.f32 1.5, %v244
    %v246 = vmul.f32 %v241, %v245
    %vm247 = vweird.f32 %v139
    %vm248 = vweird.f32 %v241
    %vm249 = vmor %vm247, %vm248
    %v250 = vsel %vm249, %v241, %v246
    %v251 = vrsqrt.pop %v142
    %v252 = vmul.f32 %v251, %v142
    %v253 = vmul.f32 %v252, %v251
    %v254 = vmul.f32 0.5, %v253
    %v255 = vsub.f32 1.5, %v254
    %v256 = vmul.f32 %v251, %v255
    %vm257 = vweird.f32 %v142
    %vm258 = vweird.f32 %v251
    %vm259 = vmor %vm257, %vm258
    %v260 = vsel %vm259, %v251, %v256
    %v261 = vrsqrt.pop %v145
    %v262 = vmul.f32 %v261, %v145
    %v263 = vmul.f32 %v262, %v261
    %v264 = vmul.f32 0.5, %v263
    %v265 = vsub.f32 1.5, %v264
    %v266 = vmul.f32 %v261, %v265
    %vm267 = vweird.f32 %v145
    %vm268 = vweird.f32 %v261
    %vm269 = vmor %vm267, %vm268
    %v270 = vsel %vm269, %v261, %v266
    %v271 = vrsqrt.pop %v148
    %v272 = vmul.f32 %v271, %v148
    %v273 = vmul.f32 %v272, %v271
    %v274 = vmul.f32 0.5, %v273
    %v275 = vsub.f32 1.5, %v274
    %v276 = vmul.f32 %v271, %v275
    %vm277 = vweird.f32 %v148
    %vm278 = vweird.f32 %v271
    %vm279 = vmor %vm277, %vm278
    %v280 = vsel %vm279, %v271, %v276
    %v281 = vrsqrt.pop %v151
    %v282 = vmul.f32 %v281, %v151
    %v283 = vmul.f32 %v282, %v281
    %v284 = vmul.f32 0.5, %v283
    %v285 = vsub.f32 1.5, %v284
    %v286 = vmul.f32 %v281, %v285
    %vm287 = vweird.f32 %v151
    %vm288 = vweird.f32 %v281
    %vm289 = vmor %vm287, %vm288
    %v290 = vsel %vm289, %v281, %v286
    %v291 = vrsqrt.pop %v154
    %v292 = vmul.f32 %v291, %v154
    %v293 = vmul.f32 %v292, %v291
    %v294 = vmul.f32 0.5, %v293
    %v295 = vsub.f32 1.5, %v294
    %v296 = vmul.f32 %v291, %v295
    %vm297 = vweird.f32 %v154
    %vm298 = vweird.f32 %v291
    %vm299 = vmor %vm297, %vm298
    %v300 = vsel %vm299, %v291, %v296
    %v301 = vrsqrt.pop %v157
    %v302 = vmul.f32 %v301, %v157
    %v303 = vmul.f32 %v302, %v301
    %v304 = vmul.f32 0.5, %v303
    %v305 = vsub.f32 1.5, %v304
    %v306 = vmul.f32 %v301, %v305
    %vm307 = vweird.f32 %v157
    %vm308 = vweird.f32 %v301
    %vm309 = vmor %vm307, %vm308
    %v310 = vsel %vm309, %v301, %v306
    %v311 = vrsqrt.pop %v160
    %v312 = vmul.f32 %v311, %v160
    %v313 = vmul.f32 %v312, %v311
    %v314 = vmul.f32 0.5, %v313
    %v315 = vsub.f32 1.5, %v314
    %v316 = vmul.f32 %v311, %v315
    %vm317 = vweird.f32 %v160
    %vm318 = vweird.f32 %v311
    %vm319 = vmor %vm317, %vm318
    %v320 = vsel %vm319, %v311, %v316
    %v321 = vmul.f32 %v51, %v170
    %v322 = vmul.f32 %v54, %v180
    %v323 = vmul.f32 %v57, %v190
    %v324 = vmul.f32 %v60, %v200
    %v325 = vmul.f32 %v63, %v210
    %v326 = vmul.f32 %v66, %v220
    %v327 = vmul.f32 %v69, %v230
    %v328 = vmul.f32 %v72, %v240
    %v329 = vmul.f32 %v75, %v250
    %v330 = vmul.f32 %v78, %v260
    %v331 = vmul.f32 %v81, %v270
    %v332 = vmul.f32 %v84, %v280
    %v333 = vmul.f32 %v87, %v290
    %v334 = vmul.f32 %v90, %v300
    %v335 = vmul.f32 %v93, %v310
    %v336 = vmul.f32 %v96, %v320
    %v337 = vmax.f32 %v321, -1.0
    %v338 = vmax.f32 %v322, -1.0
    %v339 = vmax.f32 %v323, -1.0
    %v340 = vmax.f32 %v324, -1.0
    %v341 = vmax.f32 %v325, -1.0
    %v342 = vmax.f32 %v326, -1.0
    %v343 = vmax.f32 %v327, -1.0
    %v344 = vmax.f32 %v328, -1.0
    %v345 = vmax.f32 %v329, -1.0
    %v346 = vmax.f32 %v330, -1.0
    %v347 = vmax.f32 %v331, -1.0
    %v348 = vmax.f32 %v332, -1.0
    %v349 = vmax.f32 %v333, -1.0
    %v350 = vmax.f32 %v334, -1.0
    %v351 = vmax.f32 %v335, -1.0
    %v352 = vmax.f32 %v336, -1.0
    %v353 = vmin.f32 %v337, 1.0
    %v354 = vmin.f32 %v338, 1.0
    %v355 = vmin.f32 %v339, 1.0
    %v356 = vmin.f32 %v340, 1.0
    %v357 = vmin.f32 %v341, 1.0
    %v358 = vmin.f32 %v342, 1.0
    %v359 = vmin.f32 %v343, 1.0
    %v360 = vmin.f32 %v344, 1.0
    %v361 = vmin.f32 %v345, 1.0
    %v362 = vmin.f32 %v346, 1.0
    %v363 = vmin.f32 %v347, 1.0
    %v364 = vmin.f32 %v348, 1.0
    %v365 = vmin.f32 %v349, 1.0
    %v366 = vmin.f32 %v350, 1.0
    %v367 = vmin.f32 %v351, 1.0
    %v368 = vmin.f32 %v352, 1.0
    %v369 = vmul.f32 %v353, -20.0
    %v370 = vmul.f32 %v354, -20.0
    %v371 = vmul.f32 %v355, -20.0
    %v372 = vmul.f32 %v356, -20.0
    %v373 = vmul.f32 %v357, -20.0
    %v374 = vmul.f32 %v358, -20.0
    %v375 = vmul.f32 %v359, -20.0
    %v376 = vmul.f32 %v360, -20.0
    %v377 = vmul.f32 %v361, -20.0
    %v378 = vmul.f32 %v362, -20.0
    %v379 = vmul.f32 %v363, -20.0
    %v380 = vmul.f32 %v364, -20.0
    %v381 = vmul.f32 %v365, -20.0
    %v382 = vmul.f32 %v366, -20.0
    %v383 = vmul.f32 %v367, -20.0
    %v384 = vmul.f32 %v368, -20.0
    %v385 = vadd.f32 %v369, 18.0
    %v386 = vadd.f32 %v370, 18.0
    %v387 = vadd.f32 %v371, 18.0
    %v388 = vadd.f32 %v372, 18.0
    %v389 = vadd.f32 %v373, 18.0
    %v390 = vadd.f32 %v374, 18.0
    %v391 = vadd.f32 %v375, 18.0
    %v392 = vadd.f32 %v376, 18.0
    %v393 = vadd.f32 %v377, 18.0
    %v394 = vadd.f32 %v378, 18.0
    %v395 = vadd.f32 %v379, 18.0
    %v396 = vadd.f32 %v380, 18.0
    %v397 = vadd.f32 %v381, 18.0
    %v398 = vadd.f32 %v382, 18.0
    %v399 = vadd.f32 %v383, 18.0
    %v400 = vadd.f32 %v384, 18.0
    %v401 = vmul.f32 %v353, 20.0
    %v402 = vmul.f32 %v354, 20.0
    %v403 = vmul.f32 %v355, 20.0
    %v404 = vmul.f32 %v356, 20.0
    %v405 = vmul.f32 %v357, 20.0
    %v406 = vmul.f32 %v358, 20.0
    %v407 = vmul.f32 %v359, 20.0
    %v408 = vmul.f32 %v360, 20.0
    %v409 = vmul.f32 %v361, 20.0
    %v410 = vmul.f32 %v362, 20.0
    %v411 = vmul.f32 %v363, 20.0
    %v412 = vmul.f32 %v364, 20.0
    %v413 = vmul.f32 %v365, 20.0
    %v414 = vmul.f32 %v366, 20.0
    %v415 = vmul.f32 %v367, 20.0
    %v416 = vmul.f32 %v368, 20.0
    %v417 = vadd.f32 %v401, -4.0
    %v418 = vadd.f32 %v402, -4.0
    %v419 = vadd.f32 %v403, -4.0
    %v420 = vadd.f32 %v404, -4.0
    %v421 = vadd.f32 %v405, -4.0
    %v422 = vadd.f32 %v406, -4.0
    %v423 = vadd.f32 %v407, -4.0
    %v424 = vadd.f32 %v408, -4.0
    %v425 = vadd.f32 %v409, -4.0
    %v426 = vadd.f32 %v410, -4.0
    %v427 = vadd.f32 %v411, -4.0
    %v428 = vadd.f32 %v412, -4.0
    %v429 = vadd.f32 %v413, -4.0
    %v430 = vadd.f32 %v414, -4.0
    %v431 = vadd.f32 %v415, -4.0
    %v432 = vadd.f32 %v416, -4.0
    %v449 = vlaneseq
    %v450 = vand.u32 %v449, 127
    %v451 = vperm.slane %v385, %v450
    %v452 = vadd.s32 %v450, 4294967288
    %v453 = vperm.slane %v386, %v452
    %vm454 = vcmask 130112
    %v455 = vsel %vm454, %v453, %v451
    %v456 = vadd.s32 %v450, 4294967280
    %v457 = vperm.slane %v387, %v456
    %vm458 = vcmask 195712
    %v459 = vsel %vm458, %v457, %v455
    %v460 = vadd.s32 %v450, 4294967272
    %v461 = vperm.slane %v388, %v460
    %vm462 = vcmask 261312
    %v463 = vsel %vm462, %v461, %v459
    %v464 = vadd.s32 %v450, 4294967264
    %v465 = vperm.slane %v389, %v464
    %vm466 = vcmask 326912
    %v467 = vsel %vm466, %v465, %v463
    %v468 = vadd.s32 %v450, 4294967256
    %v469 = vperm.slane %v390, %v468
    %vm470 = vcmask 392512
    %v471 = vsel %vm470, %v469, %v467
    %v472 = vadd.s32 %v450, 4294967248
    %v473 = vperm.slane %v391, %v472
    %vm474 = vcmask 458112
    %v475 = vsel %vm474, %v473, %v471
    %v476 = vadd.s32 %v450, 4294967240
    %v477 = vperm.slane %v392, %v476
    %vm478 = vcmask 523712
    %v479 = vsel %vm478, %v477, %v475
    %v480 = vadd.s32 %v450, 4294967232
    %v481 = vperm.slane %v393, %v480
    %vm482 = vcmask 589312
    %v483 = vsel %vm482, %v481, %v479
    %v484 = vadd.s32 %v450, 4294967224
    %v485 = vperm.slane %v394, %v484
    %vm486 = vcmask 654912
    %v487 = vsel %vm486, %v485, %v483
    %v488 = vadd.s32 %v450, 4294967216
    %v489 = vperm.slane %v395, %v488
    %vm490 = vcmask 720512
    %v491 = vsel %vm490, %v489, %v487
    %v492 = vadd.s32 %v450, 4294967208
    %v493 = vperm.slane %v396, %v492
    %vm494 = vcmask 786112
    %v495 = vsel %vm494, %v493, %v491
    %v496 = vadd.s32 %v450, 4294967200
    %v497 = vperm.slane %v397, %v496
    %vm498 = vcmask 851712
    %v499 = vsel %vm498, %v497, %v495
    %v500 = vadd.s32 %v450, 4294967192
    %v501 = vperm.slane %v398, %v500
    %vm502 = vcmask 917312
    %v503 = vsel %vm502, %v501, %v499
    %v504 = vadd.s32 %v450, 4294967184
    %v505 = vperm.slane %v399, %v504
    %vm506 = vcmask 982912
    %v507 = vsel %vm506, %v505, %v503
    %v508 = vadd.s32 %v450, 4294967176
    %v509 = vperm.slane %v400, %v508
    %vm510 = vcmask 1048512
    %v511 = vsel %vm510, %v509, %v507
    %v529 = vperm.slane %v417, %v450
    %v530 = vperm.slane %v418, %v452
    %v531 = vsel %vm454, %v530, %v529
    %v532 = vperm.slane %v419, %v456
    %v533 = vsel %vm458, %v532, %v531
    %v534 = vperm.slane %v420, %v460
    %v535 = vsel %vm462, %v534, %v533
    %v536 = vperm.slane %v421, %v464
    %v537 = vsel %vm466, %v536, %v535
    %v538 = vperm.slane %v422, %v468
    %v539 = vsel %vm470, %v538, %v537
    %v540 = vperm.slane %v423, %v472
    %v541 = vsel %vm474, %v540, %v539
    %v542 = vperm.slane %v424, %v476
    %v543 = vsel %vm478, %v542, %v541
    %v544 = vperm.slane %v425, %v480
    %v545 = vsel %vm482, %v544, %v543
    %v546 = vperm.slane %v426, %v484
    %v547 = vsel %vm486, %v546, %v545
    %v548 = vperm.slane %v427, %v488
    %v549 = vsel %vm490, %v548, %v547
    %v550 = vperm.slane %v428, %v492
    %v551 = vsel %vm494, %v550, %v549
    %v552 = vperm.slane %v429, %v496
    %v553 = vsel %vm498, %v552, %v551
    %v554 = vperm.slane %v430, %v500
    %v555 = vsel %vm502, %v554, %v553
    %v556 = vperm.slane %v431, %v504
    %v557 = vsel %vm506, %v556, %v555
    %v558 = vperm.slane %v432, %v508
    %v559 = vsel %vm510, %v558, %v557
    %vm561 = vcmask 1040384
    %v562 = vsel %vm561, %v511, %v559
    %563 = vst [vmem:[#allocation2] sm:$0x3] %v562
    // Predicated region
    $region10: #{tpu_custom_call.1} parent=1 // pred_check
      _
    $region11: #{tpu_custom_call.1} parent=1 // pred_check_branch
      %565 = sbr.rel (0) target = $region13
    $region12: #{tpu_custom_call.1} parent=1 // pred_region
      %567 = vsyncadd [#allocation3], 0
      %s569 = sshll.u32 [#allocation2], 4
      %s570 = int_to_ptr.vmem [resolvable:$true] %s569
      %s571 = sshll.u32 %s2, 4
      %s572 = int_to_ptr.hbm [resolvable:$true] %s571
      %574 = dma.vmem_to_hbm [thread:$0]  %s570, 32, %s572, [#allocation3]
    $region13: #{tpu_custom_call.1} parent=1 // pred_fallthru
      _
    // Predicated region
    $region14: #{tpu_custom_call.1} parent=1 // pred_check
      _
    $region15: #{tpu_custom_call.1} parent=1 // pred_check_branch
      %576 = sbr.rel (0) target = $region17
    $region16: #{tpu_custom_call.1} parent=1 // pred_region
      %578 = dma.done [#allocation3], 32
    $region17: #{tpu_custom_call.1} parent=1 // pred_fallthru
      _
    %579 = vsyncpa [#allocation3], 1

</llo_original>
